<compile_context>
chip_gen: v6e
topology: v6e:2x2x1
jax: 0.10.0
libtpu: 0.0.40
codegen_flags: <defaults>
</compile_context>

<pallas_src>
import math
import jax
import jax.numpy as jnp
from jax.experimental import pallas as pl
from jax.experimental.pallas import tpu as pltpu


# --------------------------------------------------------------------------- #
# Kernel
# --------------------------------------------------------------------------- #
def patch_embed_kernel(x_ref, w_ref, pe_ref, o_ref):
    # x_ref : (TN, NP_pad, PL)  operand dtype (bf16 or f32)
    # w_ref : (PL, D)           operand dtype
    # pe_ref: (NP_pad, D)       f32
    # o_ref : (TN, NP_pad, D)   out dtype (f32 or bf16)
    tn, np_, pl_ = x_ref.shape
    d = w_ref.shape[1]
    # NP_pad is a multiple of the sublane tile for every dtype involved, so both
    # reshapes below are layout-preserving leading-dim collapses/splits (no VMEM
    # relayout copy), and the matmul runs as one large-M MXU op per step.
    lhs = x_ref[...].reshape(tn * np_, pl_)
    y = jnp.dot(lhs, w_ref[...], preferred_element_type=jnp.float32)
    y = y.reshape(tn, np_, d)
    # PE add in f32 (broadcast over the leading batch dim is free); cast on store.
    # For d_model >= 128 (production shapes) the (NP_pad, D) trailing dims of the
    # output block are sublane/lane dense; D < 128 only occurs at toy sizes.
    o_ref[...] = (y + pe_ref[...][None, :, :]).astype(o_ref.dtype)


# --------------------------------------------------------------------------- #
# Sizing helpers
# --------------------------------------------------------------------------- #
def _round_up(x, m):
    return ((x + m - 1) // m) * m


def _sublane(dtype):
    # Rows per (sublane, 128) VMEM tile: 8 for 32-bit types, 16 for 16-bit types.
    return 8 * (4 // jnp.dtype(dtype).itemsize)


def _padded_vmem_bytes(block_shape, dtype):
    """VMEM footprint of one buffer after (sublane, 128) padding of the last 2 dims."""
    it = jnp.dtype(dtype).itemsize
    *lead, rows, cols = block_shape
    n_lead = 1
    for s in lead:
        n_lead *= s
    return n_lead * _round_up(rows, _sublane(dtype)) * _round_up(cols, 128) * it


def _tpu_topology():
    """(per-core VMEM capacity bytes, number of TensorCores), conservative fallbacks."""
    vmem = 64 * 1024 * 1024   # v7x per-TC VMEM: the smallest of the three generations
    cores = 2
    try:
        info = pltpu.get_tpu_info()
        vmem = int(info.vmem_capacity_bytes)
        # v7x exposes 64 MiB/TC and has 2 TCs; v5e/v6e expose 128 MiB and have 1 TC.
        cores = int(getattr(info, "num_cores", 0) or (2 if vmem <= 64 * 1024 * 1024 else 1))
    except Exception:
        # Capability probe only (no TPU / older JAX): keep conservative defaults.
        pass
    return vmem, cores


def _pick_tn(N, NP_pad, PL, D, op_dtype, out_dtype, vmem_budget, num_cores,
             target_step_hbm_bytes=4 * 1024 * 1024):
    """Sequences per grid step for this memory-bound op.

    Sized so one step streams ~target_step_hbm_bytes of HBM traffic (amortizing
    the ~0.35 us per-step pipeline overhead), while the double-buffered,
    (sublane, 128)-padded input + output blocks fit in vmem_budget, and the step
    count splits evenly across the chip's TensorCores.
    """
    op_it = jnp.dtype(op_dtype).itemsize
    out_it = jnp.dtype(out_dtype).itemsize
    row_hbm = NP_pad * (PL * op_it + D * out_it)     # HBM bytes per sequence per step
    tn = max(1, pl.cdiv(target_step_hbm_bytes, row_hbm))
    tn = min(tn, max(1, pl.cdiv(N, num_cores)))      # never more than one core's share

    def pipelined_vmem(t):                           # double-buffered pipelined blocks
        return (2 * _padded_vmem_bytes((t, NP_pad, PL), op_dtype)
                + 2 * _padded_vmem_bytes((t, NP_pad, D), out_dtype))

    while tn > 1 and pipelined_vmem(tn) > vmem_budget:
        tn = max(1, tn // 2)

    # Balance the "parallel" grid axis across TensorCores (v7x has 2): aim for a
    # step count that is a multiple of num_cores.  No-op on single-TC chips.
    if num_cores > 1 and N > 1:
        steps = _round_up(pl.cdiv(N, tn), num_cores)
        tn = max(1, pl.cdiv(N, steps))
    return tn


# --------------------------------------------------------------------------- #
# Forward wrapper
# --------------------------------------------------------------------------- #
def patch_embedding_forward(x, w_t, d_model, patch_len, stride, padding, *,
                            operand_dtype=jnp.bfloat16, out_dtype=jnp.float32):
    """PatchEmbedding.forward.

    x   : [B, n_vars, L] float32
    w_t : [patch_len, d_model] float32 (nn.Linear weight, transposed)
    Returns ([B*n_vars, num_patches, d_model] out_dtype, n_vars).

    operand_dtype=bfloat16 halves input HBM reads (matmul still accumulates in
    f32); pass float32 for exact nn.Linear parity.  out_dtype=bfloat16 halves
    the dominant output-write traffic at a small precision cost vs. PyTorch's
    f32 module output.
    """
    B, n_vars, L = x.shape
    N = B * n_vars

    # --- glue: ReplicationPad1d((0, padding)) ---
    x_pad = jnp.pad(x, ((0, 0), (0, 0), (0, padding)), mode="edge")
    Lp = L + padding

    # --- glue: unfold(dim=-1, size=patch_len, step=stride) ---
    # TODO(synk): fuse the unfold into the kernel (strided pl.ds slices over a
    # lane-dense (TN, Lp) block) to avoid materializing the ~patch_len/stride-x
    # duplicated patches array in HBM (~10-20% of total traffic).
    num_patches = (Lp - patch_len) // stride + 1
    starts = jnp.arange(num_patches) * stride
    idx = starts[:, None] + jnp.arange(patch_len)[None, :]            # [NP, PL]
    patches = x_pad[:, :, idx].reshape(N, num_patches, patch_len)
    patches = patches.astype(operand_dtype)
    w = w_t.astype(operand_dtype)

    # --- glue: sin/cos PositionalEmbedding table, sliced to num_patches (f32) ---
    position = jnp.arange(num_patches, dtype=jnp.float32)[:, None]
    div_term = jnp.exp(jnp.arange(0, d_model, 2, dtype=jnp.float32)
                       * -(math.log(10000.0) / d_model))
    pe = jnp.zeros((num_patches, d_model), dtype=jnp.float32)
    pe = pe.at[:, 0::2].set(jnp.sin(position * div_term))
    pe = pe.at[:, 1::2].set(jnp.cos(position * div_term)[:, : d_model // 2])

    # --- pad num_patches to the sublane tile so the in-kernel reshapes are free ---
    sub = max(_sublane(operand_dtype), _sublane(out_dtype), _sublane(jnp.float32))
    NP_pad = _round_up(num_patches, sub)
    if NP_pad != num_patches:
        patches = jnp.pad(patches, ((0, 0), (0, NP_pad - num_patches), (0, 0)))
        pe = jnp.pad(pe, ((0, NP_pad - num_patches), (0, 0)))

    # --- generation-aware tiling over N = B * n_vars ---
    vmem_capacity, num_cores = _tpu_topology()
    vmem_limit = int(0.75 * vmem_capacity)            # headroom for Mosaic scratch
    invariant_bytes = (2 * _padded_vmem_bytes((patch_len, d_model), operand_dtype)
                       + 2 * _padded_vmem_bytes((NP_pad, d_model), jnp.float32))
    vmem_budget = max(vmem_limit - invariant_bytes - 2 * 1024 * 1024, 4 * 1024 * 1024)

    TN = _pick_tn(N, NP_pad, patch_len, d_model, operand_dtype, out_dtype,
                  vmem_budget, num_cores)
    n_steps = pl.cdiv(N, TN)
    N_pad = n_steps * TN
    if N_pad != N:
        patches = jnp.pad(patches, ((0, N_pad - N), (0, 0), (0, 0)))

    op_it = jnp.dtype(operand_dtype).itemsize
    out_it = jnp.dtype(out_dtype).itemsize
    cost = pl.CostEstimate(
        flops=2 * N_pad * NP_pad * patch_len * d_model,
        transcendentals=0,
        bytes_accessed=(N_pad * NP_pad * patch_len * op_it        # patches
                        + patch_len * d_model * op_it             # weight
                        + NP_pad * d_model * 4                    # PE
                        + N_pad * NP_pad * d_model * out_it))     # output

    out = pl.pallas_call(
        patch_embed_kernel,
        out_shape=jax.ShapeDtypeStruct((N_pad, NP_pad, d_model), out_dtype),
        grid_spec=pltpu.PrefetchScalarGridSpec(
            num_scalar_prefetch=0,
            grid=(n_steps,),
            in_specs=[
                pl.BlockSpec((TN, NP_pad, patch_len), lambda i: (i, 0, 0)),
                pl.BlockSpec((patch_len, d_model), lambda i: (0, 0)),   # grid-invariant
                pl.BlockSpec((NP_pad, d_model), lambda i: (0, 0)),      # grid-invariant
            ],
            out_specs=pl.BlockSpec((TN, NP_pad, d_model), lambda i: (i, 0, 0)),
        ),
        compiler_params=pltpu.CompilerParams(
            dimension_semantics=("parallel",),
            vmem_limit_bytes=vmem_limit),
        cost_estimate=cost,
    )(patches, w, pe)

    if N_pad != N or NP_pad != num_patches:
        out = out[:N, :num_patches]
    return out, n_vars


# --------------------------------------------------------------------------- #
# Self-test
# --------------------------------------------------------------------------- #
if __name__ == "__main__":
    # Small, module-consistent shapes.
    B, n_vars, L = 2, 4, 16
    d_model, patch_len, stride, padding, dropout = 32, 8, 4, 4, 0.1

    key = jax.random.PRNGKey(0)
    kx, kw = jax.random.split(key)

    x = jax.random.normal(kx, (B, n_vars, L), dtype=jnp.float32)

    # nn.Linear(patch_len, d_model, bias=False): weight [d_model, patch_len],
    # default init U(-1/sqrt(fan_in), 1/sqrt(fan_in)). Deterministic in-script init.
    bound = 1.0 / math.sqrt(patch_len)
    w = jax.random.uniform(kw, (d_model, patch_len), dtype=jnp.float32,
                           minval=-bound, maxval=bound)
    w_t = w.T                                   # [patch_len, d_model] so out = x @ W^T

    # --- plain-JAX reference (module semantics) ---
    x_pad = jnp.pad(x, ((0, 0), (0, 0), (0, padding)), mode="edge")
    NP = (L + padding - patch_len) // stride + 1
    idx = (jnp.arange(NP) * stride)[:, None] + jnp.arange(patch_len)[None, :]
    patches_ref = x_pad[:, :, idx].reshape(B * n_vars, NP, patch_len)
    pos = jnp.arange(NP, dtype=jnp.float32)[:, None]
    div = jnp.exp(jnp.arange(0, d_model, 2, dtype=jnp.float32)
                  * -(math.log(10000.0) / d_model))
    pe_ref = jnp.zeros((NP, d_model), jnp.float32)
    pe_ref = pe_ref.at[:, 0::2].set(jnp.sin(pos * div))
    pe_ref = pe_ref.at[:, 1::2].set(jnp.cos(pos * div)[:, : d_model // 2])
    ref_f32 = (jnp.matmul(patches_ref, w_t, precision=jax.lax.Precision.HIGHEST)
               + pe_ref[None])
    ref_bf16ops = (jnp.dot(patches_ref.astype(jnp.bfloat16).reshape(-1, patch_len),
                           w_t.astype(jnp.bfloat16),
                           preferred_element_type=jnp.float32)
                   .reshape(B * n_vars, NP, d_model) + pe_ref[None])

    # 1) Default fast path: bf16 operands, f32 output.
    out, nv = patch_embedding_forward(x, w_t, d_model, patch_len, stride, padding)
    out = jax.block_until_ready(out)
    assert out.shape == (B * n_vars, NP, d_model) and out.dtype == jnp.float32
    assert nv == n_vars
    assert jnp.allclose(out, ref_bf16ops, atol=1e-4, rtol=1e-4)
    assert jnp.allclose(out, ref_f32, atol=5e-2, rtol=5e-2)

    # 2) Exact-parity path: f32 operands, f32 output (matches nn.Linear semantics).
    out_f32, _ = patch_embedding_forward(x, w_t, d_model, patch_len, stride, padding,
                                         operand_dtype=jnp.float32,
                                         out_dtype=jnp.float32)
    out_f32 = jax.block_until_ready(out_f32)
    assert jnp.allclose(out_f32, ref_f32, atol=1e-2, rtol=1e-2)

    # 3) Low-HBM-traffic path: bf16 operands and bf16 output.
    out_bf16, _ = patch_embedding_forward(x, w_t, d_model, patch_len, stride, padding,
                                          out_dtype=jnp.bfloat16)
    out_bf16 = jax.block_until_ready(out_bf16)
    assert out_bf16.dtype == jnp.bfloat16
    assert jnp.allclose(out_bf16.astype(jnp.float32), ref_f32, atol=6e-2, rtol=6e-2)

    print("KERNEL_OK")
</pallas_src>

<mosaic_0001>
module attributes {stable_mosaic.version = 11 : i64} {
  func.func @patch_embed_kernel(%arg0: i32, %arg1: memref<4x16x8xbf16, #tpu.memory_space<vmem>>, %arg2: memref<8x32xbf16, #tpu.memory_space<vmem>>, %arg3: memref<16x32xf32, #tpu.memory_space<vmem>>, %arg4: memref<4x16x32xf32, #tpu.memory_space<vmem>>) attributes {dimension_semantics = [#tpu.dimension_semantics<parallel>], iteration_bounds = array<i64: 2>, scalar_prefetch = 0 : i64, scratch_operands = 0 : i64, tpu.core_type = #tpu.core_type<tc>, window_params = [{transform_indices = @transform_0, window_bounds = array<i64: 4, 16, 8>}, {pipeline_mode = #tpu.pipeline_mode<synchronous>, transform_indices = @transform_1, window_bounds = array<i64: 8, 32>}, {pipeline_mode = #tpu.pipeline_mode<synchronous>, transform_indices = @transform_2, window_bounds = array<i64: 16, 32>}, {transform_indices = @transform_3, window_bounds = array<i64: 4, 16, 32>}]} {
    %c0 = arith.constant 0 : index
    %c0_0 = arith.constant 0 : index
    %c0_1 = arith.constant 0 : index
    %0 = vector.load %arg1[%c0, %c0_0, %c0_1] : memref<4x16x8xbf16, #tpu.memory_space<vmem>>, vector<4x16x8xbf16>
    %1 = vector.shape_cast %0 : vector<4x16x8xbf16> to vector<64x8xbf16>
    %c0_2 = arith.constant 0 : index
    %c0_3 = arith.constant 0 : index
    %2 = vector.load %arg2[%c0_2, %c0_3] : memref<8x32xbf16, #tpu.memory_space<vmem>>, vector<8x32xbf16>
    %cst = arith.constant dense<0.000000e+00> : vector<64x32xf32>
    %3 = tpu.matmul %1, %2, %cst {dimension_numbers = #tpu.dot_dimension_numbers<[1], [0], [0], [1], [0, 0, 1, 1], [], []>} : vector<64x8xbf16>, vector<8x32xbf16>, vector<64x32xf32> -> vector<64x32xf32>
    %4 = vector.shape_cast %3 : vector<64x32xf32> to vector<4x16x32xf32>
    %c0_4 = arith.constant 0 : index
    %c0_5 = arith.constant 0 : index
    %5 = vector.load %arg3[%c0_4, %c0_5] : memref<16x32xf32, #tpu.memory_space<vmem>>, vector<16x32xf32>
    %6 = vector.shape_cast %5 : vector<16x32xf32> to vector<1x16x32xf32>
    %7 = vector.broadcast %6 : vector<1x16x32xf32> to vector<4x16x32xf32>
    %8 = arith.addf %4, %7 : vector<4x16x32xf32>
    %c0_6 = arith.constant 0 : index
    %c0_7 = arith.constant 0 : index
    %c0_8 = arith.constant 0 : index
    %9 = vector.load %arg4[%c0_6, %c0_7, %c0_8] : memref<4x16x32xf32, #tpu.memory_space<vmem>>, vector<4x16x32xf32>
    tpu.vector_store %arg4[%c0_6, %c0_7, %c0_8], %8 {strides = array<i32>} : memref<4x16x32xf32, #tpu.memory_space<vmem>>, vector<4x16x32xf32>,
    return
  }
  func.func @transform_0(%arg0: i32) -> (i32, i32, i32) {
    %c0_i32 = arith.constant 0 : i32
    %c0_i32_0 = arith.constant 0 : i32
    %c0_i32_1 = arith.constant 0 : i32
    return %arg0, %c0_i32, %c0_i32_0 : i32, i32, i32
  }
  func.func @transform_1(%arg0: i32) -> (i32, i32) {
    %c0_i32 = arith.constant 0 : i32
    %c0_i32_0 = arith.constant 0 : i32
    %c0_i32_1 = arith.constant 0 : i32
    return %c0_i32, %c0_i32_0 : i32, i32
  }
  func.func @transform_2(%arg0: i32) -> (i32, i32) {
    %c0_i32 = arith.constant 0 : i32
    %c0_i32_0 = arith.constant 0 : i32
    %c0_i32_1 = arith.constant 0 : i32
    return %c0_i32, %c0_i32_0 : i32, i32
  }
  func.func @transform_3(%arg0: i32) -> (i32, i32, i32) {
    %c0_i32 = arith.constant 0 : i32
    %c0_i32_0 = arith.constant 0 : i32
    %c0_i32_1 = arith.constant 0 : i32
    return %arg0, %c0_i32, %c0_i32_0 : i32, i32, i32
  }
}

</mosaic_0001>

<llo_original>
// kernel: tpu_custom_call.1
$region0: #{tpu_custom_call.1}
  #allocation0 [shape = 'u32[]', space=smem, size = 0x4, offset = 0x4, fixed_abs, tag = 'smem constant byte address 0x4 - core index']
  #allocation1 [shape = 'u32[144,128]{1,0:T(1,128)}', space=vmem, size = 0x12000, scoped, tag = 'internal scratch']
  %s0 = inlined_call_operand.vmem [shape: bf16[8,16,8], index: 0, kind: input, shape index: {}]
  %s1 = inlined_call_operand.vmem [shape: bf16[8,32], index: 1, kind: input, shape index: {}]
  %s2 = inlined_call_operand.vmem [shape: f32[16,32], index: 2, kind: input, shape index: {}]
  %s3 = inlined_call_operand.hbm [shape: f32[8,16,32], index: 3, kind: output, shape index: {}]
  %s4 = sld [smem:[#allocation0]]
  $region45: #{tpu_custom_call.1} parent=0
    _
  %s6 = ssub.s32 1, %s4
  %s7 = scalar_select 0, %s6, %s4
  $region1: #{tpu_custom_call.1} parent=0
    #allocation2 [shape = 'u8[65536]{0}', space=vmem, size = 0x10000, scoped, tag = 'output window, operand 0']
    #allocation3 [shape = 's32[2]{0}', space=sflag, size = 0x8, scoped, tag = 'scoped memory for tpu_custom_call.1']
    %8 = vsyncpa [#allocation3], 0
    %s9 = scalar_lea.sflag [#allocation3], 1
    %10 = vsyncpa %s9, 0
    loop: start=0, step=1, limit=4
    $region2: #{tpu_custom_call.1} parent=1 // loop_pre_header
      _
    $region3: #{tpu_custom_call.1} parent=1 // loop_header
      %s12 = sphi 0, %s16
      %p13 = scmp.ge.s32.totalorder %s12, 4
      %s22 = sphi 0, %s24
      %s25 = sphi 0, %s22
      %s26 = sphi 0, %s25
      %s42 = sphi 0, %s26
      %s46 = sphi 0, %s46
      %s48 = sphi 0, %s46
      %s49 = sphi 0, %s48
      %s63 = sphi 0, %s49
      %s67 = sphi 0, %s67
      %s69 = sphi 0, %s67
      %s70 = sphi 0, %s69
      %s84 = sphi 0, %s70
      %s90 = sphi 0, %s92
      %s93 = sphi 0, %s90
      %s94 = sphi 0, %s93
      %s110 = sphi 0, %s94
    $region4: #{tpu_custom_call.1} parent=1 // loop_header_branch
      %15 = sbr.rel (%p13) target = $region8
    $region5: #{tpu_custom_call.1} parent=1 // loop_body
      %s17 = ssub.s32 %s12, 1
      %s18 = ssub.s32 %s12, 2
      %s19 = sadd.s32 %s12, 1
      %s20 = ssub.s32 %s12, %s19
      %p21 = scmp.eq.s32.totalorder %s20, 0
      %s23 = sadd.s32 %s22, 1
      %s24 = scalar_select %p21, %s22, %s23
      %p27 = pneg %p21
      %p28 = scmp.eq.s32.totalorder %s12, 1
      %p29 = por %p27, %p28
      %p30 = scmp.ne.s32.totalorder %s22, %s25
      %p31 = scmp.eq.s32.totalorder %s12, 0
      %p32 = por %p30, %p31
      %p33 = scmp.ne.s32.totalorder %s22, %s25
      %p34 = scmp.eq.s32.totalorder %s17, 1
      %p35 = por %p33, %p34
      %p36 = scmp.ne.s32.totalorder %s25, %s26
      %p37 = scmp.eq.s32.totalorder %s17, 0
      %p38 = por %p36, %p37
      %p39 = scmp.ne.s32.totalorder %s25, %s26
      %p40 = scmp.eq.s32.totalorder %s18, 1
      %p41 = por %p39, %p40
      %p43 = scmp.ne.s32.totalorder %s26, %s42
      %p44 = scmp.eq.s32.totalorder %s18, 0
      %p45 = por %p43, %p44
      %s47 = sadd.s32 %s46, 1
      %p50 = scmp.eq.s32.totalorder %s12, 1
      %p51 = scmp.ne.s32.totalorder %s46, %s48
      %p52 = scmp.eq.s32.totalorder %s12, 0
      %p53 = por %p51, %p52
      %p54 = scmp.ne.s32.totalorder %s46, %s48
      %p55 = scmp.eq.s32.totalorder %s17, 1
      %p56 = por %p54, %p55
      %p57 = scmp.ne.s32.totalorder %s48, %s49
      %p58 = scmp.eq.s32.totalorder %s17, 0
      %p59 = por %p57, %p58
      %p60 = scmp.ne.s32.totalorder %s48, %s49
      %p61 = scmp.eq.s32.totalorder %s18, 1
      %p62 = por %p60, %p61
      %p64 = scmp.ne.s32.totalorder %s49, %s63
      %p65 = scmp.eq.s32.totalorder %s18, 0
      %p66 = por %p64, %p65
      %s68 = sadd.s32 %s67, 1
      %p71 = scmp.eq.s32.totalorder %s12, 1
      %p72 = scmp.ne.s32.totalorder %s67, %s69
      %p73 = scmp.eq.s32.totalorder %s12, 0
      %p74 = por %p72, %p73
      %p75 = scmp.ne.s32.totalorder %s67, %s69
      %p76 = scmp.eq.s32.totalorder %s17, 1
      %p77 = por %p75, %p76
      %p78 = scmp.ne.s32.totalorder %s69, %s70
      %p79 = scmp.eq.s32.totalorder %s17, 0
      %p80 = por %p78, %p79
      %p81 = scmp.ne.s32.totalorder %s69, %s70
      %p82 = scmp.eq.s32.totalorder %s18, 1
      %p83 = por %p81, %p82
      %p85 = scmp.ne.s32.totalorder %s70, %s84
      %p86 = scmp.eq.s32.totalorder %s18, 0
      %p87 = por %p85, %p86
      %s88 = ssub.s32 %s12, %s19
      %p89 = scmp.eq.s32.totalorder %s88, 0
      %s91 = sadd.s32 %s90, 1
      %s92 = scalar_select %p89, %s90, %s91
      %p95 = pneg %p89
      %p96 = scmp.eq.s32.totalorder %s12, 1
      %p97 = por %p95, %p96
      %p98 = scmp.ne.s32.totalorder %s90, %s93
      %p99 = scmp.eq.s32.totalorder %s12, 0
      %p100 = por %p98, %p99
      %p101 = scmp.ne.s32.totalorder %s90, %s93
      %p102 = scmp.eq.s32.totalorder %s17, 1
      %p103 = por %p101, %p102
      %p104 = scmp.ne.s32.totalorder %s93, %s94
      %p105 = scmp.eq.s32.totalorder %s17, 0
      %p106 = por %p104, %p105
      %p107 = scmp.ne.s32.totalorder %s93, %s94
      %p108 = scmp.eq.s32.totalorder %s18, 1
      %p109 = por %p107, %p108
      %p111 = scmp.ne.s32.totalorder %s94, %s110
      %p112 = scmp.eq.s32.totalorder %s18, 0
      %p113 = por %p111, %p112
      %p114 = scmp.le.s32.totalorder 1, %s12
      %p115 = scmp.lt.s32.totalorder %s12, 3
      %p116 = pnand %p114, %p115
      %p117 = pneg %p116
      // Predicated region
      $region9: #{tpu_custom_call.1} parent=5 // pred_check
        _
      $region10: #{tpu_custom_call.1} parent=5 // pred_check_branch
        %119 = sbr.rel (%p116) target = $region12
      $region11: #{tpu_custom_call.1} parent=5 // pred_region
        %s120 = ssub.s32 %s12, 1
        // Predicated region
        $region13: #{tpu_custom_call.1} parent=11 // pred_check
          %p121 = pneg %p59
        $region14: #{tpu_custom_call.1} parent=11 // pred_check_branch
          %123 = sbr.rel (%p121) target = $region16
        $region15: #{tpu_custom_call.1} parent=11 // pred_region
          _
        $region16: #{tpu_custom_call.1} parent=11 // pred_fallthru
          _
        // Predicated region
        $region17: #{tpu_custom_call.1} parent=11 // pred_check
          %p124 = pneg %p80
        $region18: #{tpu_custom_call.1} parent=11 // pred_check_branch
          %126 = sbr.rel (%p124) target = $region20
        $region19: #{tpu_custom_call.1} parent=11 // pred_region
          _
        $region20: #{tpu_custom_call.1} parent=11 // pred_fallthru
          _
      $region12: #{tpu_custom_call.1} parent=5 // pred_fallthru
        _
      %p127 = scmp.lt.s32.totalorder %s12, 2
      // Predicated region
      $region21: #{tpu_custom_call.1} parent=5 // pred_check
        %p128 = pneg %p127
      $region22: #{tpu_custom_call.1} parent=5 // pred_check_branch
        %130 = sbr.rel (%p128) target = $region24
      $region23: #{tpu_custom_call.1} parent=5 // pred_region
        // Predicated region
        $region25: #{tpu_custom_call.1} parent=23 // pred_check
          %p131 = pneg %p32
        $region26: #{tpu_custom_call.1} parent=23 // pred_check_branch
          %133 = sbr.rel (%p131) target = $region28
        $region27: #{tpu_custom_call.1} parent=23 // pred_region
          %s134 = smul.u32 4, %s12
          %p135 = scmp.lt.s32.totalorder %s134, 7
          %s136 = scalar_select %p135, %s134, 7
          %s137 = smul.addr %s136, 2
          %s138 = smul.addr %s137, 4
          %s139 = scalar_lea.vmem %s0, %s138
          %s140 = smul.u32 4, %s12
        $region28: #{tpu_custom_call.1} parent=23 // pred_fallthru
          _
      $region24: #{tpu_custom_call.1} parent=5 // pred_fallthru
        _
      %p141 = scmp.le.s32.totalorder 1, %s12
      %p142 = scmp.lt.s32.totalorder %s12, 3
      %p143 = pnand %p141, %p142
      %p144 = pneg %p143
      // Predicated region
      $region29: #{tpu_custom_call.1} parent=5 // pred_check
        _
      $region30: #{tpu_custom_call.1} parent=5 // pred_check_branch
        %146 = sbr.rel (%p143) target = $region32
      $region31: #{tpu_custom_call.1} parent=5 // pred_region
        %s147 = ssub.s32 %s12, 1
        %s148 = smul.u32 4, %s17
        %p149 = scmp.lt.s32.totalorder %s148, 7
        %s150 = scalar_select %p149, %s148, 7
        %s151 = smul.addr %s150, 2
        %s152 = smul.addr %s151, 4
        %s153 = scalar_lea.vmem %s0, %s152
        %p154 = pneg %p38
        %p155 = pneg %p35
        %p156 = pneg %p59
        %p157 = pneg %p56
        %p158 = pneg %p80
        %p159 = pneg %p77
        %p160 = pneg %p106
        %p161 = pneg %p103
        %s162 = sand.u32 %s93, 1
        %s163 = scalar_lea.sflag [#allocation3], %s162
        %s164 = sand.u32 %s93, 1
        %s165 = smul.addr %s164, 64
        %s166 = scalar_lea.vmem [#allocation2], %s165
        %s167 = smul.u32 4, %s17
        %p168 = scmp.lt.s32.totalorder %s167, 7
        %s169 = scalar_select %p168, %s167, 7
        %s170 = smul.addr %s169, 2
        %s171 = smul.addr %s170, 4
        %s172 = scalar_lea.vmem %s0, %s171
        %s173 = smul.u32 4, %s17
        %s174 = smul.u32 4, %s17
        %v176 = vld [vmem:[%s172] sm:$0xf]
        %v177 = vld [vmem:[%s172 + $0x4] sm:$0xf]
        %v178 = vld [vmem:[%s172 + $0x8] sm:$0xf]
        %v179 = vld [vmem:[%s172 + $0xc] sm:$0xf]
        %v180 = vld [vmem:[%s172 + $0x10] sm:$0xf]
        %v181 = vld [vmem:[%s172 + $0x14] sm:$0xf]
        %v182 = vld [vmem:[%s172 + $0x18] sm:$0xf]
        %v183 = vld [vmem:[%s172 + $0x1c] sm:$0xf]
        %v184 = vld [vmem:[%s1] sm:$0xf]
        %v193 = vunpack.c.l.b16 %v176
        %v194 = vunpack.c.l.b16 %v177
        %v195 = vunpack.c.l.b16 %v178
        %v196 = vunpack.c.l.b16 %v179
        %v197 = vunpack.c.l.b16 %v180
        %v198 = vunpack.c.l.b16 %v181
        %v199 = vunpack.c.l.b16 %v182
        %v200 = vunpack.c.l.b16 %v183
        %v201 = vpack.c.b16 %v194, %v193
        %v202 = vpack.c.b16 %v196, %v195
        %v203 = vpack.c.b16 %v198, %v197
        %v204 = vpack.c.b16 %v200, %v199
        %vm205 = vcmask 64512
        %v207 = vsel %vm205, %v201, 0
        %v210 = vsel %vm205, %v202, 0
        %v213 = vsel %vm205, %v203, 0
        %v216 = vsel %vm205, %v204, 0
        %vm218 = vcmask 1043456
        %v220 = vsel %vm218, %v184, 0
        %222 = vmatprep.subr.bf16.mxu0 0
        %223 = vmatpush1.bf16.msra.mxu0 0
        %224 = vmatprep.subr.bf16.mxu0 0
        %225 = vmatpush1.bf16.msra.mxu0 0
        %226 = vmatprep.subr.bf16.mxu0 0
        %227 = vmatpush1.bf16.msra.mxu0 0
        %228 = vmatprep.subr.bf16.mxu0 0
        %229 = vmatpush1.bf16.msra.mxu0 0
        %230 = vmatprep.subr.bf16.mxu0 0
        %231 = vmatpush1.bf16.msra.mxu0 0
        %232 = vmatprep.subr.bf16.mxu0 0
        %233 = vmatpush1.bf16.msra.mxu0 0
        %234 = vmatprep.subr.bf16.mxu0 0
        %235 = vmatpush1.bf16.msra.mxu0 0
        %236 = vmatprep.subr.bf16.mxu0 0
        %237 = vmatpush1.bf16.msra.mxu0 %v220
        %238 = vmatprep.subr.bf16.mxu0 0
        %239 = vmatpush2.bf16.msra.mxu0 0
        %240 = vmatprep.subr.bf16.mxu0 0
        %241 = vmatpush2.bf16.msra.mxu0 0
        %242 = vmatprep.subr.bf16.mxu0 0
        %243 = vmatpush2.bf16.msra.mxu0 0
        %244 = vmatprep.subr.bf16.mxu0 0
        %245 = vmatpush2.bf16.msra.mxu0 0
        %246 = vmatprep.subr.bf16.mxu0 0
        %247 = vmatpush2.bf16.msra.mxu0 0
        %248 = vmatprep.subr.bf16.mxu0 0
        %249 = vmatpush2.bf16.msra.mxu0 0
        %250 = vmatprep.subr.bf16.mxu0 0
        %251 = vmatpush2.bf16.msra.mxu0 0
        %252 = vmatprep.subr.bf16.mxu0 0
        %253 = vmatpush2.bf16.msra.mxu0 0
        %254 = vmatprep.mubr.bf16.mxu0 0
        %255 = vmatmul.mubr.bf16.gmra.mxu0 %v207
        %v256 = vpop.f32.mrf.mxu0
        %v257 = vadd.f32 0.0, %v256
        %v258 = vpop.f32.mrf.mxu0
        %v259 = vpop.f32.mrf.mxu0
        %v260 = vadd.f32 0.0, %v259
        %v261 = vpop.f32.mrf.mxu0
        %262 = vmatprep.mubr.bf16.mxu0 0
        %263 = vmatmul.mubr.bf16.gmra.mxu0 %v210
        %v264 = vpop.f32.mrf.mxu0
        %v265 = vadd.f32 0.0, %v264
        %v266 = vpop.f32.mrf.mxu0
        %v267 = vpop.f32.mrf.mxu0
        %v268 = vadd.f32 0.0, %v267
        %v269 = vpop.f32.mrf.mxu0
        %270 = vmatprep.mubr.bf16.mxu0 0
        %271 = vmatmul.mubr.bf16.gmra.mxu0 %v213
        %v272 = vpop.f32.mrf.mxu0
        %v273 = vadd.f32 0.0, %v272
        %v274 = vpop.f32.mrf.mxu0
        %v275 = vpop.f32.mrf.mxu0
        %v276 = vadd.f32 0.0, %v275
        %v277 = vpop.f32.mrf.mxu0
        %278 = vmatprep.mubr.bf16.mxu0 0
        %279 = vmatmul.mubr.bf16.gmra.mxu0 %v216
        %v280 = vpop.f32.mrf.mxu0
        %v281 = vadd.f32 0.0, %v280
        %v282 = vpop.f32.mrf.mxu0
        %v283 = vpop.f32.mrf.mxu0
        %v284 = vadd.f32 0.0, %v283
        %v285 = vpop.f32.mrf.mxu0
        %286 = vdwg.mxu0
        %v287 = vld [vmem:[%s2] sm:$0xff]
        %v288 = vld [vmem:[%s2 + $0x8] sm:$0xff]
        %v289 = vadd.f32 %v257, %v287
        %v290 = vadd.f32 %v260, %v288
        %v291 = vadd.f32 %v265, %v287
        %v292 = vadd.f32 %v268, %v288
        %v293 = vadd.f32 %v273, %v287
        %v294 = vadd.f32 %v276, %v288
        %v295 = vadd.f32 %v281, %v287
        %v296 = vadd.f32 %v284, %v288
        %vm297 = vcmask 261120
        %298 = vst.msk [vmem:[%s166] sm:$0xff] %vm297, %v289
        %299 = vst.msk [vmem:[%s166 + $0x8] sm:$0xff] %vm297, %v290
        %300 = vst.msk [vmem:[%s166 + $0x10] sm:$0xff] %vm297, %v291
        %301 = vst.msk [vmem:[%s166 + $0x18] sm:$0xff] %vm297, %v292
        %302 = vst.msk [vmem:[%s166 + $0x20] sm:$0xff] %vm297, %v293
        %303 = vst.msk [vmem:[%s166 + $0x28] sm:$0xff] %vm297, %v294
        %304 = vst.msk [vmem:[%s166 + $0x30] sm:$0xff] %vm297, %v295
        %305 = vst.msk [vmem:[%s166 + $0x38] sm:$0xff] %vm297, %v296
        %s306 = sand.u32 %s93, 1
        %s307 = scalar_lea.sflag [#allocation3], %s306
        %s308 = sand.u32 %s93, 1
        %s309 = smul.addr %s308, 64
        %s310 = scalar_lea.vmem [#allocation2], %s309
        // Predicated region
        $region33: #{tpu_custom_call.1} parent=31 // pred_check
          %p311 = pneg %p103
        $region34: #{tpu_custom_call.1} parent=31 // pred_check_branch
          %313 = sbr.rel (%p311) target = $region36
        $region35: #{tpu_custom_call.1} parent=31 // pred_region
          %s314 = smul.u32 4, %s17
          %s316 = ssub.s32 1024, 1024
          %317 = vsyncadd %s307, %s316
          %s318 = smul.addr %s314, 2
          %s319 = smul.addr %s318, 128
          %s320 = scalar_lea.hbm %s3, %s319
          %s321 = sshll.u32 %s310, 4
          %s322 = int_to_ptr.vmem [resolvable:$true] %s321
          %327 = dma.vmem_to_hbm [thread:$0]  %s322, 1024, %s320, %s307, 128, 128, 8
        $region36: #{tpu_custom_call.1} parent=31 // pred_fallthru
          _
      $region32: #{tpu_custom_call.1} parent=5 // pred_fallthru
        _
      %p328 = scmp.le.s32.totalorder 2, %s12
      // Predicated region
      $region37: #{tpu_custom_call.1} parent=5 // pred_check
        %p329 = pneg %p328
      $region38: #{tpu_custom_call.1} parent=5 // pred_check_branch
        %331 = sbr.rel (%p329) target = $region40
      $region39: #{tpu_custom_call.1} parent=5 // pred_region
        %s332 = ssub.s32 %s12, 2
        // Predicated region
        $region41: #{tpu_custom_call.1} parent=39 // pred_check
          %p333 = pneg %p109
        $region42: #{tpu_custom_call.1} parent=39 // pred_check_branch
          %335 = sbr.rel (%p333) target = $region44
        $region43: #{tpu_custom_call.1} parent=39 // pred_region
          %s336 = sand.u32 %s94, 1
          %s337 = scalar_lea.sflag [#allocation3], %s336
          %s338 = sand.u32 %s94, 1
          %s339 = smul.addr %s338, 64
          %s340 = scalar_lea.vmem [#allocation2], %s339
          %341 = dma.done %s337, 1024
        $region44: #{tpu_custom_call.1} parent=39 // pred_fallthru
          _
      $region40: #{tpu_custom_call.1} parent=5 // pred_fallthru
        _
    $region6: #{tpu_custom_call.1} parent=1 // loop_footer
      %s16 = sadd.s32 1, %s12
    $region7: #{tpu_custom_call.1} parent=1 // loop_footer_branch
      %11 = sbr.rel target = $region3
    $region8: #{tpu_custom_call.1} parent=1 // loop_exit
      _
    %342 = vsyncpa [#allocation3], 1
    %s343 = scalar_lea.sflag [#allocation3], 1
    %344 = vsyncpa %s343, 1

</llo_original>
